<compile_context>
chip_gen: v5e
topology: v5e:2x2
jax: 0.10.0
libtpu: 0.0.40
codegen_flags: <defaults>
</compile_context>

<pallas_src>
import jax
import jax.numpy as jnp
from jax.experimental import pallas as pl
from jax.experimental.pallas import tpu as pltpu


def hr_cal_kernel(x_ref, w1_ref, b1_ref, w2_ref, b2_ref, w3_ref, b3_ref,
                  hr_ref, hr_class_ref):
    cdt = w1_ref.dtype  # matmul-input dtype (bf16 or f32); accumulation is f32

    # ---- MLP backbone: Linear -> (Dropout=id) -> ReLU, twice, then Linear ----
    h = x_ref[...]
    h = jnp.dot(h, w1_ref[...], preferred_element_type=jnp.float32) + b1_ref[...]
    h = jnp.maximum(h, 0.0)
    h = jnp.dot(h.astype(cdt), w2_ref[...],
                preferred_element_type=jnp.float32) + b2_ref[...]
    h = jnp.maximum(h, 0.0)
    logits = jnp.dot(h.astype(cdt), w3_ref[...],
                     preferred_element_type=jnp.float32) + b3_ref[...]

    # ---- Softmax over class dim (axis=1), all f32 ----
    m = jnp.max(logits, axis=1, keepdims=True)
    e = jnp.exp(logits - m)
    denom = jnp.sum(e, axis=1, keepdims=True)
    r = pl.reciprocal(denom, approx=True)        # EUP vrcp seed
    r = r * (2.0 - denom * r)                    # one Newton step -> f32 accuracy
    hr_class_ref[...] = e * r

    # ---- argmax on logits reusing m (== argmax of probs, exact tie-breaking) ----
    n_class = logits.shape[1]
    idx = jax.lax.broadcasted_iota(jnp.int32, logits.shape, 1)
    cand = jnp.where(logits >= m, idx, n_class)  # first max index wins
    arg = jnp.min(cand, axis=1, keepdims=True)   # (bb, 1) int32
    hr_ref[...] = (arg + 40).astype(jnp.float32)


def hr_cal_forward(x, params, *, block_b=1024, matmul_dtype=jnp.bfloat16):
    """params = (w1, b1, w2, b2, w3, b3); weights (in, out), biases (1, out).

    Pass matmul_dtype=jnp.float32 for exact f32 matmuls (e.g. strict parity).
    """
    w1, b1, w2, b2, w3, b3 = params
    B, c_in = x.shape
    n_class = w3.shape[-1]

    # Batch tiling: one full-extent block when small, else `block_b`-row tiles
    # (batch padded up) so the batch axis can be gridded / megacore-sharded.
    if B <= block_b:
        bb, Bp = B, B
    else:
        bb = block_b
        Bp = pl.cdiv(B, bb) * bb
    if Bp != B:
        x = jnp.concatenate([x, jnp.zeros((Bp - B, c_in), x.dtype)], axis=0)

    # bf16 matmul inputs / f32 accumulation: MXU-native on v6e/v7x, halves the
    # dominant x HBM traffic at large B.  Biases + elementwise math stay f32.
    xk = x.astype(matmul_dtype)
    w1k = w1.astype(matmul_dtype)
    w2k = w2.astype(matmul_dtype)
    w3k = w3.astype(matmul_dtype)

    row = lambda i: (i, 0)       # batch-tiled operands
    pinned = lambda i: (0, 0)    # constant block index -> stays resident in VMEM

    flops = 2 * Bp * (w1.shape[0] * w1.shape[1]
                      + w2.shape[0] * w2.shape[1]
                      + w3.shape[0] * w3.shape[1])
    bytes_accessed = (
        xk.size * xk.dtype.itemsize
        + sum(a.size * a.dtype.itemsize for a in (w1k, b1, w2k, b2, w3k, b3))
        + Bp * (1 + n_class) * 4)

    hr, hr_class = pl.pallas_call(
        hr_cal_kernel,
        out_shape=(
            jax.ShapeDtypeStruct((Bp, 1), jnp.float32),        # hr
            jax.ShapeDtypeStruct((Bp, n_class), jnp.float32),  # hr_class (probs)
        ),
        grid=(Bp // bb,),
        in_specs=[
            pl.BlockSpec((bb, c_in), row),
            pl.BlockSpec(w1k.shape, pinned), pl.BlockSpec(b1.shape, pinned),
            pl.BlockSpec(w2k.shape, pinned), pl.BlockSpec(b2.shape, pinned),
            pl.BlockSpec(w3k.shape, pinned), pl.BlockSpec(b3.shape, pinned),
        ],
        out_specs=(
            pl.BlockSpec((bb, 1), row),
            pl.BlockSpec((bb, n_class), row),
        ),
        compiler_params=pltpu.CompilerParams(
            dimension_semantics=("parallel",)),
        cost_estimate=pl.CostEstimate(
            flops=flops,
            transcendentals=Bp * n_class,
            bytes_accessed=bytes_accessed),
    )(xk, w1k, b1, w2k, b2, w3k, b3)

    return hr[:B], hr_class[:B]


def init_params(key, channels, out_class):
    """channels = [in, h1, h2]; returns deterministic Linear params."""
    ks = jax.random.split(key, 6)
    dims = list(channels) + [out_class]
    params = []
    for i in range(len(dims) - 1):
        fan_in, fan_out = dims[i], dims[i + 1]
        w = jax.random.normal(ks[2 * i], (fan_in, fan_out), jnp.float32) * (1.0 / fan_in) ** 0.5
        b = jax.random.normal(ks[2 * i + 1], (1, fan_out), jnp.float32) * 0.01
        params += [w, b]
    return tuple(params)


if __name__ == "__main__":
    key = jax.random.PRNGKey(0)
    k_x, k_p = jax.random.split(key)

    # Small shapes consistent with the module:
    #   opt.hr_cal_class_channle = [32, 64, 32], opt.hr_cal_out_class = 16
    B, channels, out_class = 8, [32, 64, 32], 16
    x = jax.random.normal(k_x, (B, channels[0]), jnp.float32)
    params = init_params(k_p, channels, out_class)

    hr, hr_class = hr_cal_forward(x, params)
    jax.block_until_ready((hr, hr_class))

    # Sanity: softmax rows sum to 1, hr in [40, 40 + out_class)
    assert hr.shape == (B, 1) and hr_class.shape == (B, out_class)
    assert bool(jnp.all(jnp.abs(jnp.sum(hr_class, axis=1) - 1.0) < 1e-4))
    assert bool(jnp.all((hr >= 40.0) & (hr < 40.0 + out_class)))
    print("KERNEL_OK")
</pallas_src>

<mosaic_0001>
module attributes {stable_mosaic.version = 11 : i64} {
  func.func @hr_cal_kernel(%arg0: i32, %arg1: memref<8x32xbf16, #tpu.memory_space<vmem>>, %arg2: memref<32x64xbf16, #tpu.memory_space<vmem>>, %arg3: memref<1x64xf32, #tpu.memory_space<vmem>>, %arg4: memref<64x32xbf16, #tpu.memory_space<vmem>>, %arg5: memref<1x32xf32, #tpu.memory_space<vmem>>, %arg6: memref<32x16xbf16, #tpu.memory_space<vmem>>, %arg7: memref<1x16xf32, #tpu.memory_space<vmem>>, %arg8: memref<8x1xf32, #tpu.memory_space<vmem>>, %arg9: memref<8x16xf32, #tpu.memory_space<vmem>>) attributes {dimension_semantics = [#tpu.dimension_semantics<parallel>], iteration_bounds = array<i64: 1>, scalar_prefetch = 0 : i64, scratch_operands = 0 : i64, tpu.core_type = #tpu.core_type<tc>, window_params = [{transform_indices = @transform_0, window_bounds = array<i64: 8, 32>}, {pipeline_mode = #tpu.pipeline_mode<synchronous>, transform_indices = @transform_1, window_bounds = array<i64: 32, 64>}, {pipeline_mode = #tpu.pipeline_mode<synchronous>, transform_indices = @transform_2, window_bounds = array<i64: 1, 64>}, {pipeline_mode = #tpu.pipeline_mode<synchronous>, transform_indices = @transform_3, window_bounds = array<i64: 64, 32>}, {pipeline_mode = #tpu.pipeline_mode<synchronous>, transform_indices = @transform_4, window_bounds = array<i64: 1, 32>}, {pipeline_mode = #tpu.pipeline_mode<synchronous>, transform_indices = @transform_5, window_bounds = array<i64: 32, 16>}, {pipeline_mode = #tpu.pipeline_mode<synchronous>, transform_indices = @transform_6, window_bounds = array<i64: 1, 16>}, {transform_indices = @transform_7, window_bounds = array<i64: 8, 1>}, {transform_indices = @transform_8, window_bounds = array<i64: 8, 16>}]} {
    %c0 = arith.constant 0 : index
    %c0_0 = arith.constant 0 : index
    %0 = vector.load %arg1[%c0, %c0_0] : memref<8x32xbf16, #tpu.memory_space<vmem>>, vector<8x32xbf16>
    %c0_1 = arith.constant 0 : index
    %c0_2 = arith.constant 0 : index
    %1 = vector.load %arg2[%c0_1, %c0_2] : memref<32x64xbf16, #tpu.memory_space<vmem>>, vector<32x64xbf16>
    %cst = arith.constant dense<0.000000e+00> : vector<8x64xf32>
    %2 = tpu.matmul %0, %1, %cst {dimension_numbers = #tpu.dot_dimension_numbers<[1], [0], [0], [1], [0, 0, 1, 1], [], []>} : vector<8x32xbf16>, vector<32x64xbf16>, vector<8x64xf32> -> vector<8x64xf32>
    %c0_3 = arith.constant 0 : index
    %c0_4 = arith.constant 0 : index
    %3 = vector.load %arg3[%c0_3, %c0_4] : memref<1x64xf32, #tpu.memory_space<vmem>>, vector<1x64xf32>
    %4 = vector.broadcast %3 : vector<1x64xf32> to vector<8x64xf32>
    %5 = arith.addf %2, %4 : vector<8x64xf32>
    %cst_5 = arith.constant 0.000000e+00 : f32
    %6 = vector.broadcast %cst_5 : f32 to vector<8x64xf32>
    %7 = arith.maximumf %5, %6 : vector<8x64xf32>
    %8 = arith.truncf %7 : vector<8x64xf32> to vector<8x64xbf16>
    %c0_6 = arith.constant 0 : index
    %c0_7 = arith.constant 0 : index
    %9 = vector.load %arg4[%c0_6, %c0_7] : memref<64x32xbf16, #tpu.memory_space<vmem>>, vector<64x32xbf16>
    %cst_8 = arith.constant dense<0.000000e+00> : vector<8x32xf32>
    %10 = tpu.matmul %8, %9, %cst_8 {dimension_numbers = #tpu.dot_dimension_numbers<[1], [0], [0], [1], [0, 0, 1, 1], [], []>} : vector<8x64xbf16>, vector<64x32xbf16>, vector<8x32xf32> -> vector<8x32xf32>
    %c0_9 = arith.constant 0 : index
    %c0_10 = arith.constant 0 : index
    %11 = vector.load %arg5[%c0_9, %c0_10] : memref<1x32xf32, #tpu.memory_space<vmem>>, vector<1x32xf32>
    %12 = vector.broadcast %11 : vector<1x32xf32> to vector<8x32xf32>
    %13 = arith.addf %10, %12 : vector<8x32xf32>
    %cst_11 = arith.constant 0.000000e+00 : f32
    %14 = vector.broadcast %cst_11 : f32 to vector<8x32xf32>
    %15 = arith.maximumf %13, %14 : vector<8x32xf32>
    %16 = arith.truncf %15 : vector<8x32xf32> to vector<8x32xbf16>
    %c0_12 = arith.constant 0 : index
    %c0_13 = arith.constant 0 : index
    %17 = vector.load %arg6[%c0_12, %c0_13] : memref<32x16xbf16, #tpu.memory_space<vmem>>, vector<32x16xbf16>
    %cst_14 = arith.constant dense<0.000000e+00> : vector<8x16xf32>
    %18 = tpu.matmul %16, %17, %cst_14 {dimension_numbers = #tpu.dot_dimension_numbers<[1], [0], [0], [1], [0, 0, 1, 1], [], []>} : vector<8x32xbf16>, vector<32x16xbf16>, vector<8x16xf32> -> vector<8x16xf32>
    %c0_15 = arith.constant 0 : index
    %c0_16 = arith.constant 0 : index
    %19 = vector.load %arg7[%c0_15, %c0_16] : memref<1x16xf32, #tpu.memory_space<vmem>>, vector<1x16xf32>
    %20 = vector.broadcast %19 : vector<1x16xf32> to vector<8x16xf32>
    %21 = arith.addf %18, %20 : vector<8x16xf32>
    %cst_17 = arith.constant dense<0xFF800000> : vector<8xf32>
    %22 = vector.multi_reduction <maximumf>, %21, %cst_17 [1] : vector<8x16xf32> to vector<8xf32>
    %23 = vector.shape_cast %22 : vector<8xf32> to vector<8x1xf32>
    %24 = vector.broadcast %23 : vector<8x1xf32> to vector<8x16xf32>
    %25 = arith.subf %21, %24 : vector<8x16xf32>
    %26 = math.exp %25 : vector<8x16xf32>
    %cst_18 = arith.constant dense<0.000000e+00> : vector<8xf32>
    %27 = vector.multi_reduction <add>, %26, %cst_18 [1] : vector<8x16xf32> to vector<8xf32>
    %28 = vector.shape_cast %27 : vector<8xf32> to vector<8x1xf32>
    %29 = tpu.reciprocal %28 {approx = true} : vector<8x1xf32> -> vector<8x1xf32>
    %30 = arith.mulf %28, %29 : vector<8x1xf32>
    %cst_19 = arith.constant 2.000000e+00 : f32
    %31 = vector.broadcast %cst_19 : f32 to vector<8x1xf32>
    %32 = arith.subf %31, %30 : vector<8x1xf32>
    %33 = arith.mulf %29, %32 : vector<8x1xf32>
    %34 = vector.broadcast %33 : vector<8x1xf32> to vector<8x16xf32>
    %35 = arith.mulf %26, %34 : vector<8x16xf32>
    %c0_20 = arith.constant 0 : index
    %c0_21 = arith.constant 0 : index
    %36 = vector.load %arg9[%c0_20, %c0_21] : memref<8x16xf32, #tpu.memory_space<vmem>>, vector<8x16xf32>
    tpu.vector_store %arg9[%c0_20, %c0_21], %35 {strides = array<i32>} : memref<8x16xf32, #tpu.memory_space<vmem>>, vector<8x16xf32>,
    %37 = tpu.iota {dimensions = array<i32: 1>} : vector<8x16xi32>
    %38 = vector.broadcast %23 : vector<8x1xf32> to vector<8x16xf32>
    %39 = arith.cmpf oge, %21, %38 : vector<8x16xf32>
    %c16_i32 = arith.constant 16 : i32
    %40 = vector.broadcast %c16_i32 : i32 to vector<8x16xi32>
    %41 = arith.select %39, %37, %40 : vector<8x16xi1>, vector<8x16xi32>
    %cst_22 = arith.constant dense<2147483647> : vector<8xi32>
    %42 = vector.multi_reduction <minsi>, %41, %cst_22 [1] : vector<8x16xi32> to vector<8xi32>
    %43 = vector.shape_cast %42 : vector<8xi32> to vector<8x1xi32>
    %c40_i32 = arith.constant 40 : i32
    %44 = vector.broadcast %c40_i32 : i32 to vector<8x1xi32>
    %45 = arith.addi %43, %44 : vector<8x1xi32>
    %46 = arith.sitofp %45 : vector<8x1xi32> to vector<8x1xf32>
    %c0_23 = arith.constant 0 : index
    %c0_24 = arith.constant 0 : index
    %47 = vector.load %arg8[%c0_23, %c0_24] : memref<8x1xf32, #tpu.memory_space<vmem>>, vector<8x1xf32>
    tpu.vector_store %arg8[%c0_23, %c0_24], %46 {strides = array<i32>} : memref<8x1xf32, #tpu.memory_space<vmem>>, vector<8x1xf32>,
    return
  }
  func.func @transform_0(%arg0: i32) -> (i32, i32) {
    %c0_i32 = arith.constant 0 : i32
    %c0_i32_0 = arith.constant 0 : i32
    return %arg0, %c0_i32 : i32, i32
  }
  func.func @transform_1(%arg0: i32) -> (i32, i32) {
    %c0_i32 = arith.constant 0 : i32
    %c0_i32_0 = arith.constant 0 : i32
    %c0_i32_1 = arith.constant 0 : i32
    return %c0_i32, %c0_i32_0 : i32, i32
  }
  func.func @transform_2(%arg0: i32) -> (i32, i32) {
    %c0_i32 = arith.constant 0 : i32
    %c0_i32_0 = arith.constant 0 : i32
    %c0_i32_1 = arith.constant 0 : i32
    return %c0_i32, %c0_i32_0 : i32, i32
  }
  func.func @transform_3(%arg0: i32) -> (i32, i32) {
    %c0_i32 = arith.constant 0 : i32
    %c0_i32_0 = arith.constant 0 : i32
    %c0_i32_1 = arith.constant 0 : i32
    return %c0_i32, %c0_i32_0 : i32, i32
  }
  func.func @transform_4(%arg0: i32) -> (i32, i32) {
    %c0_i32 = arith.constant 0 : i32
    %c0_i32_0 = arith.constant 0 : i32
    %c0_i32_1 = arith.constant 0 : i32
    return %c0_i32, %c0_i32_0 : i32, i32
  }
  func.func @transform_5(%arg0: i32) -> (i32, i32) {
    %c0_i32 = arith.constant 0 : i32
    %c0_i32_0 = arith.constant 0 : i32
    %c0_i32_1 = arith.constant 0 : i32
    return %c0_i32, %c0_i32_0 : i32, i32
  }
  func.func @transform_6(%arg0: i32) -> (i32, i32) {
    %c0_i32 = arith.constant 0 : i32
    %c0_i32_0 = arith.constant 0 : i32
    %c0_i32_1 = arith.constant 0 : i32
    return %c0_i32, %c0_i32_0 : i32, i32
  }
  func.func @transform_7(%arg0: i32) -> (i32, i32) {
    %c0_i32 = arith.constant 0 : i32
    %c0_i32_0 = arith.constant 0 : i32
    return %arg0, %c0_i32 : i32, i32
  }
  func.func @transform_8(%arg0: i32) -> (i32, i32) {
    %c0_i32 = arith.constant 0 : i32
    %c0_i32_0 = arith.constant 0 : i32
    return %arg0, %c0_i32 : i32, i32
  }
}

</mosaic_0001>

<llo_original>
// kernel: tpu_custom_call.1
$region0: #{tpu_custom_call.1}
  #allocation0 [shape = 'u32[]', space=smem, size = 0x4, offset = 0x4, fixed_abs, tag = 'smem constant byte address 0x4 - core index']
  #allocation1 [shape = 'u32[72,128]{1,0:T(1,128)}', space=vmem, size = 0x9000, scoped, tag = 'internal scratch']
  %s0 = inlined_call_operand.vmem [shape: bf16[8,32], index: 0, kind: input, shape index: {}]
  %s1 = inlined_call_operand.vmem [shape: bf16[32,64], index: 1, kind: input, shape index: {}]
  %s2 = inlined_call_operand.vmem [shape: f32[1,64], index: 2, kind: input, shape index: {}]
  %s3 = inlined_call_operand.vmem [shape: bf16[64,32], index: 3, kind: input, shape index: {}]
  %s4 = inlined_call_operand.vmem [shape: f32[1,32], index: 4, kind: input, shape index: {}]
  %s5 = inlined_call_operand.vmem [shape: bf16[32,16], index: 5, kind: input, shape index: {}]
  %s6 = inlined_call_operand.vmem [shape: f32[1,16], index: 6, kind: input, shape index: {}]
  %s7 = inlined_call_operand.vmem [shape: f32[8,1], index: 7, kind: output, shape index: {0}]
  %s8 = inlined_call_operand.hbm [shape: f32[8,16], index: 8, kind: output, shape index: {1}]
  %9 = xla_tuple %s7, %s8
  %s10 = sld [smem:[#allocation0]]
  $region46: #{tpu_custom_call.1} parent=0
    _
  %s12 = ssub.s32 1, %s10
  %s13 = scalar_select 0, %s12, %s10
  $region1: #{tpu_custom_call.1} parent=0
    #allocation2 [shape = 'u8[4096]{0}', space=vmem, size = 0x1000, scoped, tag = 'output window, operand 1, single buffered']
    #allocation3 [shape = 's32[1]{0}', space=sflag, size = 0x4, scoped, tag = 'scoped memory for tpu_custom_call.1']
    %14 = vsyncpa [#allocation3], 0
    // Predicated region
    $region2: #{tpu_custom_call.1} parent=1 // pred_check
      _
    $region3: #{tpu_custom_call.1} parent=1 // pred_check_branch
      %16 = sbr.rel (0) target = $region5
    $region4: #{tpu_custom_call.1} parent=1 // pred_region
      _
    $region5: #{tpu_custom_call.1} parent=1 // pred_fallthru
      _
    // Predicated region
    $region6: #{tpu_custom_call.1} parent=1 // pred_check
      _
    $region7: #{tpu_custom_call.1} parent=1 // pred_check_branch
      %18 = sbr.rel (0) target = $region9
    $region8: #{tpu_custom_call.1} parent=1 // pred_region
      _
    $region9: #{tpu_custom_call.1} parent=1 // pred_fallthru
      _
    // Predicated region
    $region10: #{tpu_custom_call.1} parent=1 // pred_check
      _
    $region11: #{tpu_custom_call.1} parent=1 // pred_check_branch
      %20 = sbr.rel (0) target = $region13
    $region12: #{tpu_custom_call.1} parent=1 // pred_region
      _
    $region13: #{tpu_custom_call.1} parent=1 // pred_fallthru
      _
    // Predicated region
    $region14: #{tpu_custom_call.1} parent=1 // pred_check
      _
    $region15: #{tpu_custom_call.1} parent=1 // pred_check_branch
      %22 = sbr.rel (0) target = $region17
    $region16: #{tpu_custom_call.1} parent=1 // pred_region
      _
    $region17: #{tpu_custom_call.1} parent=1 // pred_fallthru
      _
    // Predicated region
    $region18: #{tpu_custom_call.1} parent=1 // pred_check
      _
    $region19: #{tpu_custom_call.1} parent=1 // pred_check_branch
      %24 = sbr.rel (0) target = $region21
    $region20: #{tpu_custom_call.1} parent=1 // pred_region
      _
    $region21: #{tpu_custom_call.1} parent=1 // pred_fallthru
      _
    // Predicated region
    $region22: #{tpu_custom_call.1} parent=1 // pred_check
      _
    $region23: #{tpu_custom_call.1} parent=1 // pred_check_branch
      %26 = sbr.rel (0) target = $region25
    $region24: #{tpu_custom_call.1} parent=1 // pred_region
      _
    $region25: #{tpu_custom_call.1} parent=1 // pred_fallthru
      _
    // Predicated region
    $region26: #{tpu_custom_call.1} parent=1 // pred_check
      _
    $region27: #{tpu_custom_call.1} parent=1 // pred_check_branch
      %28 = sbr.rel (0) target = $region29
    $region28: #{tpu_custom_call.1} parent=1 // pred_region
      _
    $region29: #{tpu_custom_call.1} parent=1 // pred_fallthru
      _
    %v30 = vld [vmem:[%s0] sm:$0xf]
    %v31 = vld [vmem:[%s1] sm:$0xf]
    %v32 = vld [vmem:[%s1 + $0x4] sm:$0xf]
    %v33 = vld [vmem:[%s1 + $0x8] sm:$0xf]
    %v34 = vld [vmem:[%s1 + $0xc] sm:$0xf]
    %v35 = vld [vmem:[%s2] sm:$0x1]
    %v37 = vperm.slane %v35, 0
    %v43 = vunpack.c.l.b16 %v31
    %v44 = vunpack.c.l.b16 %v32
    %v45 = vunpack.c.l.b16 %v33
    %v46 = vunpack.c.l.b16 %v34
    %v47 = vpack.c.b16 %v44, %v43
    %v48 = vpack.c.b16 %v46, %v45
    %vm51 = vcmask 261120
    %v53 = vsel %vm51, %v30, 0
    %55 = vmatpush.bf16.msra.mxu0 0
    %56 = vmatpush.bf16.msra.mxu0 0
    %57 = vmatpush.bf16.msra.mxu0 0
    %58 = vmatpush.bf16.msra.mxu0 0
    %59 = vmatpush.bf16.msra.mxu0 0
    %60 = vmatpush.bf16.msra.mxu0 0
    %61 = vmatpush.bf16.msra.mxu0 %v48
    %62 = vmatpush.bf16.msra.mxu0 %v47
    %63 = vmatmul.bf16.gmra.mxu0 %v53
    %v64 = vpop.f32.mrf.mxu0
    %v65 = vadd.f32 %v37, %v64
    %v66 = vpop.f32.mrf.mxu0
    %67 = vdwg.mxu0
    %v68 = vmax.f32 %v65, 0.0
    %v69 = vpack.c.bf16 %v68, %v68
    %v70 = vld [vmem:[%s3] sm:$0xf]
    %v71 = vld [vmem:[%s3 + $0x4] sm:$0xf]
    %v72 = vld [vmem:[%s3 + $0x8] sm:$0xf]
    %v73 = vld [vmem:[%s3 + $0xc] sm:$0xf]
    %v74 = vld [vmem:[%s3 + $0x10] sm:$0xf]
    %v75 = vld [vmem:[%s3 + $0x14] sm:$0xf]
    %v76 = vld [vmem:[%s3 + $0x18] sm:$0xf]
    %v77 = vld [vmem:[%s3 + $0x1c] sm:$0xf]
    %v78 = vld [vmem:[%s4] sm:$0x1]
    %v80 = vperm.slane %v78, 0
    %v90 = vunpack.c.l.b16 %v70
    %v91 = vunpack.c.l.b16 %v71
    %v92 = vunpack.c.l.b16 %v72
    %v93 = vunpack.c.l.b16 %v73
    %v94 = vunpack.c.l.b16 %v74
    %v95 = vunpack.c.l.b16 %v75
    %v96 = vunpack.c.l.b16 %v76
    %v97 = vunpack.c.l.b16 %v77
    %v98 = vpack.c.b16 %v91, %v90
    %v99 = vpack.c.b16 %v93, %v92
    %v100 = vpack.c.b16 %v95, %v94
    %v101 = vpack.c.b16 %v97, %v96
    %vm106 = vcmask 523264
    %v108 = vsel %vm106, %v69, 0
    %110 = vmatpush.bf16.msra.mxu0 0
    %111 = vmatpush.bf16.msra.mxu0 0
    %112 = vmatpush.bf16.msra.mxu0 0
    %113 = vmatpush.bf16.msra.mxu0 0
    %114 = vmatpush.bf16.msra.mxu0 %v101
    %115 = vmatpush.bf16.msra.mxu0 %v100
    %116 = vmatpush.bf16.msra.mxu0 %v99
    %117 = vmatpush.bf16.msra.mxu0 %v98
    %118 = vmatmul.bf16.gmra.mxu0 %v108
    %v119 = vpop.f32.mrf.mxu0
    %v120 = vadd.f32 %v80, %v119
    %v121 = vpop.f32.mrf.mxu0
    %122 = vdwg.mxu0
    %v123 = vmax.f32 %v120, 0.0
    %v124 = vpack.c.bf16 %v123, %v123
    %v125 = vld [vmem:[%s5] sm:$0xf]
    %v126 = vld [vmem:[%s5 + $0x4] sm:$0xf]
    %v127 = vld [vmem:[%s5 + $0x8] sm:$0xf]
    %v128 = vld [vmem:[%s5 + $0xc] sm:$0xf]
    %v129 = vld [vmem:[%s6] sm:$0x1]
    %v131 = vperm.slane %v129, 0
    %v137 = vunpack.c.l.b16 %v125
    %v138 = vunpack.c.l.b16 %v126
    %v139 = vunpack.c.l.b16 %v127
    %v140 = vunpack.c.l.b16 %v128
    %v141 = vpack.c.b16 %v138, %v137
    %v142 = vpack.c.b16 %v140, %v139
    %v146 = vsel %vm51, %v124, 0
    %148 = vmatpush.bf16.msra.mxu0 0
    %149 = vmatpush.bf16.msra.mxu0 0
    %150 = vmatpush.bf16.msra.mxu0 0
    %151 = vmatpush.bf16.msra.mxu0 0
    %152 = vmatpush.bf16.msra.mxu0 0
    %153 = vmatpush.bf16.msra.mxu0 0
    %154 = vmatpush.bf16.msra.mxu0 %v142
    %155 = vmatpush.bf16.msra.mxu0 %v141
    %156 = vmatmul.bf16.gmra.mxu0 %v146
    %v157 = vpop.f32.mrf.mxu0
    %v158 = vadd.f32 %v131, %v157
    %v159 = vpop.f32.mrf.mxu0
    %160 = vdwg.mxu0
    %vm161 = vcmask 130048
    %v162 = vsel %vm161, %v158, -inf
    %163 = vmax.xlane.f32.xlu0 %v162
    %v164 = vpop.xlane.xlu0 %163
    %v165 = vsub.f32 %v158, %v164
    %v166 = vmul.f32 %v165, 1.442695
    %v167 = vpow.pop %v166
    %v168 = vsel %vm161, %v167, 0.0
    %169 = vadd.xlane.f32.xlu0 %v168
    %v170 = vpop.xlane.xlu0 %169
    %v171 = vrcp.pop %v170
    %v172 = vmul.f32 %v170, %v171
    %v173 = vsub.f32 2.0, %v172
    %v174 = vmul.f32 %v171, %v173
    %v175 = vmul.f32 %v167, %v174
    %176 = vst.msk [vmem:[#allocation2] sm:$0xff] %vm161, %v175
    %v177 = vlaneseq
    %v178 = vand.u32 %v177, 127
    %vm179 = vcmp.ge.f32.partialorder %v158, %v164
    %v180 = vsel %vm179, %v178, 16
    %v181 = vsel %vm161, %v180, 2147483647
    %v182 = vand.u32 %v181, 65535
    %v183 = vshra.s32 %v181, 16
    %v184 = vcvt.s32.f32 %v182
    %v185 = vcvt.s32.f32 %v183
    %186 = vmin.xlane.f32.xlu0 %v185
    %v187 = vpop.xlane.xlu0 %186
    %vm188 = vcmp.eq.f32.partialorder %v185, %v187
    %v189 = vsel %vm188, %v184, inf
    %190 = vmin.xlane.f32.xlu0 %v189
    %v191 = vpop.xlane.xlu0 %190
    %v192 = vcvt.f32.s32 %v191
    %v193 = vcvt.f32.s32 %v187
    %v194 = vshll.u32 %v193, 16
    %v195 = vadd.s32 %v194, %v192
    %v196 = vadd.s32 %v195, 40
    %v197 = vcvt.s32.f32 %v196
    %vm198 = vcmask 7168
    %199 = vst.msk [vmem:[%s7] sm:$0xff] %vm198, %v197
    // Predicated region
    $region30: #{tpu_custom_call.1} parent=1 // pred_check
      _
    $region31: #{tpu_custom_call.1} parent=1 // pred_check_branch
      %201 = sbr.rel (0) target = $region33
    $region32: #{tpu_custom_call.1} parent=1 // pred_region
      _
    $region33: #{tpu_custom_call.1} parent=1 // pred_fallthru
      _
    // Predicated region
    $region34: #{tpu_custom_call.1} parent=1 // pred_check
      _
    $region35: #{tpu_custom_call.1} parent=1 // pred_check_branch
      %203 = sbr.rel (0) target = $region37
    $region36: #{tpu_custom_call.1} parent=1 // pred_region
      %205 = vsyncadd [#allocation3], 0
      %s207 = sshll.u32 [#allocation2], 4
      %s208 = int_to_ptr.vmem [resolvable:$true] %s207
      %s209 = sshll.u32 %s8, 4
      %s210 = int_to_ptr.hbm [resolvable:$true] %s209
      %212 = dma.vmem_to_hbm [thread:$0]  %s208, 128, %s210, [#allocation3]
    $region37: #{tpu_custom_call.1} parent=1 // pred_fallthru
      _
    // Predicated region
    $region38: #{tpu_custom_call.1} parent=1 // pred_check
      _
    $region39: #{tpu_custom_call.1} parent=1 // pred_check_branch
      %214 = sbr.rel (0) target = $region41
    $region40: #{tpu_custom_call.1} parent=1 // pred_region
      _
    $region41: #{tpu_custom_call.1} parent=1 // pred_fallthru
      _
    // Predicated region
    $region42: #{tpu_custom_call.1} parent=1 // pred_check
      _
    $region43: #{tpu_custom_call.1} parent=1 // pred_check_branch
      %216 = sbr.rel (0) target = $region45
    $region44: #{tpu_custom_call.1} parent=1 // pred_region
      %218 = dma.done [#allocation3], 128
    $region45: #{tpu_custom_call.1} parent=1 // pred_fallthru
      _
    %219 = vsyncpa [#allocation3], 1

</llo_original>
